<compile_context>
chip_gen: v5e
topology: v5e:2x2
jax: 0.10.0
libtpu: 0.0.40
codegen_flags: <defaults>
</compile_context>

<pallas_src>
import jax
import jax.numpy as jnp
from jax.experimental import pallas as pl
from jax.experimental.pallas import tpu as pltpu


def _vb_kernel(x_ref, eps_ref, out_ref):
    """Blocks: x_ref / eps_ref / out_ref are all (1, 2, tr, lane).

    The leading size-2 axis selects mu (index 0) vs logvar (index 1) for the
    input and out1 vs out2 for the output; it is not a sublane/lane axis, so
    slicing it is free (no relayout).
    """
    mu = x_ref[:, 0:1].astype(jnp.float32)        # (1, 1, tr, lane)
    logvar = x_ref[:, 1:2].astype(jnp.float32)
    std = jnp.exp(0.5 * logvar)

    # Interleave compute and store so eps1/eps2-sized f32 temporaries are never
    # live simultaneously (smaller vreg/VMEM footprint -> larger tiles fit).
    out_ref[:, 0:1] = (eps_ref[:, 0:1].astype(jnp.float32) * std + mu).astype(out_ref.dtype)
    out_ref[:, 1:2] = (eps_ref[:, 1:2].astype(jnp.float32) * std + mu).astype(out_ref.dtype)


def _choose_layout(half, L):
    """Factor the contiguous per-half slab (half*L elements) into (rows, lane)
    with lane a multiple of 128 when possible -> lane-dense, unmasked stores."""
    n = half * L
    for lane in (1024, 512, 256, 128):
        if n % lane == 0:
            return n // lane, lane
    # Awkward / tiny sizes: full-extent lane dim (still a legal block; masked
    # stores only matter when n is large, which real VAE widths avoid).
    return 1, n


def _choose_row_tile(rows, lane):
    """Largest row tile that (a) is a multiple of 8 or the full extent,
    (b) divides rows, (c) keeps one half-block <= ~512 KiB of f32."""
    max_elems = 128 * 1024                      # per-half block element budget
    cap = max(8, (max_elems // max(lane, 1)) // 8 * 8)
    t = min(cap, (rows // 8) * 8)
    while t >= 8:
        if rows % t == 0:
            return t
        t -= 8
    return rows                                 # full extent (always legal)


def variational_bottleneck_fwd(x, key):
    """x: [B, C, L] (torch layout). Returns (out, mu, logvar) like the nn.Module.

    `key` is a jax PRNG key; thread a fresh key per call to match PyTorch's
    fresh-noise-per-forward semantics.
    """
    B, C, L = x.shape
    assert C % 2 == 0, "channel dim must be even for torch.chunk(x, 2, dim=1)"
    half = C // 2

    rows, lane = _choose_layout(half, L)
    tr = _choose_row_tile(rows, lane)

    # Free reshape: x_r[:, 0] is the mu slab, x_r[:, 1] the logvar slab
    # (each half of the channel axis is contiguous in row-major order).
    x_r = x.reshape(B, 2, rows, lane)

    # Fresh standard-normal noise, drawn directly in the kernel layout:
    # eps[:, 0] -> eps1, eps[:, 1] -> eps2.
    eps = jax.random.normal(key, (B, 2, rows, lane), dtype=x.dtype)

    grid = (B, rows // tr)
    blk = (1, 2, tr, lane)

    out_r = pl.pallas_call(
        _vb_kernel,
        out_shape=jax.ShapeDtypeStruct((B, 2, rows, lane), x.dtype),
        grid_spec=pltpu.PrefetchScalarGridSpec(
            num_scalar_prefetch=0,
            grid=grid,
            in_specs=[
                pl.BlockSpec(blk, lambda b, r: (b, 0, r, 0)),   # x (mu+logvar)
                pl.BlockSpec(blk, lambda b, r: (b, 0, r, 0)),   # eps (eps1+eps2)
            ],
            out_specs=pl.BlockSpec(blk, lambda b, r: (b, 0, r, 0)),
        ),
        compiler_params=pltpu.CompilerParams(
            dimension_semantics=("parallel", "parallel")),
    )(x_r, eps)

    out = out_r.reshape(B, C, L)
    # mu / logvar are byte-identical slices of x -> return zero-copy views,
    # saving 2 * B*half*L of pure HBM write traffic.
    mu = x[:, :half, :]
    logvar = x[:, half:, :]
    return out, mu, logvar


if __name__ == "__main__":
    root = jax.random.PRNGKey(0)
    k_x, k_eps = jax.random.split(root)

    # Small shapes consistent with the forward: [batch, channels, length].
    B, C, L = 2, 4, 16
    x = jax.random.normal(k_x, (B, C, L), dtype=jnp.float32)

    out, mu, logvar = variational_bottleneck_fwd(x, k_eps)
    jax.block_until_ready((out, mu, logvar))

    half = C // 2
    mu_ref, logvar_ref = jnp.split(x, 2, axis=1)
    std_ref = jnp.exp(0.5 * logvar_ref)

    # Deterministic parts must match exactly.
    assert out.shape == (B, C, L)
    assert mu.shape == (B, half, L) and logvar.shape == (B, half, L)
    assert jnp.allclose(mu, mu_ref)
    assert jnp.allclose(logvar, logvar_ref)

    # Stochastic part: out = eps*std + mu with eps ~ N(0,1).
    eps1_hat = (out[:, :half, :] - mu_ref) / std_ref
    eps2_hat = (out[:, half:, :] - mu_ref) / std_ref
    eps_all = jnp.concatenate([eps1_hat.ravel(), eps2_hat.ravel()])
    assert bool(jnp.all(jnp.isfinite(out)))
    assert abs(float(jnp.mean(eps_all))) < 0.5
    assert 0.5 < float(jnp.std(eps_all)) < 1.6
    # eps1 and eps2 must be two different draws.
    assert not jnp.allclose(eps1_hat, eps2_hat)

    print("KERNEL_OK")
</pallas_src>

<mosaic_0001>
module attributes {stable_mosaic.version = 11 : i64} {
  func.func @_vb_kernel(%arg0: i32, %arg1: i32, %arg2: memref<1x2x1x32xf32, #tpu.memory_space<vmem>>, %arg3: memref<1x2x1x32xf32, #tpu.memory_space<vmem>>, %arg4: memref<1x2x1x32xf32, #tpu.memory_space<vmem>>) attributes {dimension_semantics = [#tpu.dimension_semantics<parallel>, #tpu.dimension_semantics<parallel>], iteration_bounds = array<i64: 2, 1>, scalar_prefetch = 0 : i64, scratch_operands = 0 : i64, tpu.core_type = #tpu.core_type<tc>, window_params = [{transform_indices = @transform_0, window_bounds = array<i64: 1, 2, 1, 32>}, {transform_indices = @transform_1, window_bounds = array<i64: 1, 2, 1, 32>}, {transform_indices = @transform_2, window_bounds = array<i64: 1, 2, 1, 32>}]} {
    %c0 = arith.constant 0 : index
    %c0_0 = arith.constant 0 : index
    %c0_1 = arith.constant 0 : index
    %c0_2 = arith.constant 0 : index
    %0 = vector.load %arg2[%c0, %c0_0, %c0_1, %c0_2] : memref<1x2x1x32xf32, #tpu.memory_space<vmem>>, vector<1x1x1x32xf32>
    %c0_3 = arith.constant 0 : index
    %c1 = arith.constant 1 : index
    %c0_4 = arith.constant 0 : index
    %c0_5 = arith.constant 0 : index
    %1 = vector.load %arg2[%c0_3, %c1, %c0_4, %c0_5] : memref<1x2x1x32xf32, #tpu.memory_space<vmem>>, vector<1x1x1x32xf32>
    %cst = arith.constant 5.000000e-01 : f32
    %2 = vector.broadcast %cst : f32 to vector<1x1x1x32xf32>
    %3 = arith.mulf %2, %1 : vector<1x1x1x32xf32>
    %4 = math.exp %3 : vector<1x1x1x32xf32>
    %c0_6 = arith.constant 0 : index
    %c0_7 = arith.constant 0 : index
    %c0_8 = arith.constant 0 : index
    %c0_9 = arith.constant 0 : index
    %5 = vector.load %arg3[%c0_6, %c0_7, %c0_8, %c0_9] : memref<1x2x1x32xf32, #tpu.memory_space<vmem>>, vector<1x1x1x32xf32>
    %6 = arith.mulf %5, %4 : vector<1x1x1x32xf32>
    %7 = arith.addf %6, %0 : vector<1x1x1x32xf32>
    %c0_10 = arith.constant 0 : index
    %c0_11 = arith.constant 0 : index
    %c0_12 = arith.constant 0 : index
    %c0_13 = arith.constant 0 : index
    %8 = vector.load %arg4[%c0_10, %c0_11, %c0_12, %c0_13] : memref<1x2x1x32xf32, #tpu.memory_space<vmem>>, vector<1x1x1x32xf32>
    tpu.vector_store %arg4[%c0_10, %c0_11, %c0_12, %c0_13], %7 {strides = array<i32>} : memref<1x2x1x32xf32, #tpu.memory_space<vmem>>, vector<1x1x1x32xf32>,
    %c0_14 = arith.constant 0 : index
    %c1_15 = arith.constant 1 : index
    %c0_16 = arith.constant 0 : index
    %c0_17 = arith.constant 0 : index
    %9 = vector.load %arg3[%c0_14, %c1_15, %c0_16, %c0_17] : memref<1x2x1x32xf32, #tpu.memory_space<vmem>>, vector<1x1x1x32xf32>
    %10 = arith.mulf %9, %4 : vector<1x1x1x32xf32>
    %11 = arith.addf %10, %0 : vector<1x1x1x32xf32>
    %c0_18 = arith.constant 0 : index
    %c1_19 = arith.constant 1 : index
    %c0_20 = arith.constant 0 : index
    %c0_21 = arith.constant 0 : index
    %12 = vector.load %arg4[%c0_18, %c1_19, %c0_20, %c0_21] : memref<1x2x1x32xf32, #tpu.memory_space<vmem>>, vector<1x1x1x32xf32>
    tpu.vector_store %arg4[%c0_18, %c1_19, %c0_20, %c0_21], %11 {strides = array<i32>} : memref<1x2x1x32xf32, #tpu.memory_space<vmem>>, vector<1x1x1x32xf32>,
    return
  }
  func.func @transform_0(%arg0: i32, %arg1: i32) -> (i32, i32, i32, i32) {
    %c0_i32 = arith.constant 0 : i32
    %c0_i32_0 = arith.constant 0 : i32
    %c0_i32_1 = arith.constant 0 : i32
    return %arg0, %c0_i32, %arg1, %c0_i32_0 : i32, i32, i32, i32
  }
  func.func @transform_1(%arg0: i32, %arg1: i32) -> (i32, i32, i32, i32) {
    %c0_i32 = arith.constant 0 : i32
    %c0_i32_0 = arith.constant 0 : i32
    %c0_i32_1 = arith.constant 0 : i32
    return %arg0, %c0_i32, %arg1, %c0_i32_0 : i32, i32, i32, i32
  }
  func.func @transform_2(%arg0: i32, %arg1: i32) -> (i32, i32, i32, i32) {
    %c0_i32 = arith.constant 0 : i32
    %c0_i32_0 = arith.constant 0 : i32
    %c0_i32_1 = arith.constant 0 : i32
    return %arg0, %c0_i32, %arg1, %c0_i32_0 : i32, i32, i32, i32
  }
}

</mosaic_0001>

<llo_original>
// kernel: tpu_custom_call.1
$region0: #{tpu_custom_call.1}
  #allocation0 [shape = 'u32[]', space=smem, size = 0x4, offset = 0x4, fixed_abs, tag = 'smem constant byte address 0x4 - core index']
  #allocation1 [shape = 'u32[72,128]{1,0:T(1,128)}', space=vmem, size = 0x9000, scoped, tag = 'internal scratch']
  %s0 = inlined_call_operand.hbm [shape: f32[2,2,1,32], index: 0, kind: input, shape index: {}]
  %s1 = inlined_call_operand.hbm [shape: f32[2,2,1,32], index: 1, kind: input, shape index: {}]
  %s2 = inlined_call_operand.hbm [shape: f32[2,2,1,32], index: 2, kind: output, shape index: {}]
  %s3 = sld [smem:[#allocation0]]
  $region49: #{tpu_custom_call.1} parent=0
    _
  %s5 = ssub.s32 1, %s3
  %s6 = scalar_select 0, %s5, %s3
  $region1: #{tpu_custom_call.1} parent=0
    #allocation2 [shape = 'u8[2048]{0}', space=vmem, size = 0x800, scoped, tag = 'input window, operand 0']
    #allocation3 [shape = 's32[2]{0}', space=sflag, size = 0x8, scoped, tag = 'scoped memory for tpu_custom_call.1']
    #allocation4 [shape = 's32[2]{0}', space=sflag, size = 0x8, scoped, tag = 'scoped memory for tpu_custom_call.1']
    #allocation5 [shape = 'u8[2048]{0}', space=vmem, size = 0x800, scoped, tag = 'input window, operand 1']
    #allocation6 [shape = 's32[2]{0}', space=sflag, size = 0x8, scoped, tag = 'scoped memory for tpu_custom_call.1']
    #allocation7 [shape = 'u8[2048]{0}', space=vmem, size = 0x800, scoped, tag = 'output window, operand 0']
    %7 = vsyncpa [#allocation3], 0
    %s8 = scalar_lea.sflag [#allocation3], 1
    %9 = vsyncpa %s8, 0
    %10 = vsyncpa [#allocation6], 0
    %s11 = scalar_lea.sflag [#allocation6], 1
    %12 = vsyncpa %s11, 0
    %13 = vsyncpa [#allocation4], 0
    %s14 = scalar_lea.sflag [#allocation4], 1
    %15 = vsyncpa %s14, 0
    loop: start=0, step=1, limit=4
    $region2: #{tpu_custom_call.1} parent=1 // loop_pre_header
      _
    $region3: #{tpu_custom_call.1} parent=1 // loop_header
      %s17 = sphi 0, %s21
      %p18 = scmp.ge.s32.totalorder %s17, 4
      %s24 = sphi 0, %s36
      %s25 = sphi 0, %s32
      %s26 = sphi 0, %s24
      %s27 = sphi 0, %s25
      %s28 = sphi 0, %s26
      %s29 = sphi 0, %s27
      %s41 = sphi 0, %s43
      %s44 = sphi 0, %s41
      %s45 = sphi 0, %s44
      %s61 = sphi 0, %s45
      %s69 = sphi 0, %s71
      %s72 = sphi 0, %s69
      %s73 = sphi 0, %s72
      %s89 = sphi 0, %s73
      %s97 = sphi 0, %s99
      %s100 = sphi 0, %s97
      %s101 = sphi 0, %s100
      %s117 = sphi 0, %s101
    $region4: #{tpu_custom_call.1} parent=1 // loop_header_branch
      %20 = sbr.rel (%p18) target = $region8
    $region5: #{tpu_custom_call.1} parent=1 // loop_body
      %s22 = ssub.s32 %s17, 1
      %s23 = ssub.s32 %s17, 2
      %s30 = sadd.s32 1, %s25
      %p31 = scmp.ge.s32.totalorder %s30, 1
      %s32 = scalar_select %p31, 0, %s30
      %s33 = sadd.s32 1, %s24
      %s34 = scalar_select %p31, %s33, %s24
      %p35 = scmp.ge.s32.totalorder %s34, 2
      %s36 = scalar_select %p35, 0, %s34
      %s37 = ssub.s32 %s24, %s36
      %s38 = ssub.s32 %s25, %s32
      %s39 = sor.u32 %s37, %s38
      %p40 = scmp.eq.s32.totalorder %s39, 0
      %s42 = sadd.s32 %s41, 1
      %s43 = scalar_select %p40, %s41, %s42
      %p46 = pneg %p40
      %p47 = scmp.eq.s32.totalorder %s17, 1
      %p48 = por %p46, %p47
      %p49 = scmp.ne.s32.totalorder %s41, %s44
      %p50 = scmp.eq.s32.totalorder %s17, 0
      %p51 = por %p49, %p50
      %p52 = scmp.ne.s32.totalorder %s41, %s44
      %p53 = scmp.eq.s32.totalorder %s22, 1
      %p54 = por %p52, %p53
      %p55 = scmp.ne.s32.totalorder %s44, %s45
      %p56 = scmp.eq.s32.totalorder %s22, 0
      %p57 = por %p55, %p56
      %p58 = scmp.ne.s32.totalorder %s44, %s45
      %p59 = scmp.eq.s32.totalorder %s23, 1
      %p60 = por %p58, %p59
      %p62 = scmp.ne.s32.totalorder %s45, %s61
      %p63 = scmp.eq.s32.totalorder %s23, 0
      %p64 = por %p62, %p63
      %s65 = ssub.s32 %s24, %s36
      %s66 = ssub.s32 %s25, %s32
      %s67 = sor.u32 %s65, %s66
      %p68 = scmp.eq.s32.totalorder %s67, 0
      %s70 = sadd.s32 %s69, 1
      %s71 = scalar_select %p68, %s69, %s70
      %p74 = pneg %p68
      %p75 = scmp.eq.s32.totalorder %s17, 1
      %p76 = por %p74, %p75
      %p77 = scmp.ne.s32.totalorder %s69, %s72
      %p78 = scmp.eq.s32.totalorder %s17, 0
      %p79 = por %p77, %p78
      %p80 = scmp.ne.s32.totalorder %s69, %s72
      %p81 = scmp.eq.s32.totalorder %s22, 1
      %p82 = por %p80, %p81
      %p83 = scmp.ne.s32.totalorder %s72, %s73
      %p84 = scmp.eq.s32.totalorder %s22, 0
      %p85 = por %p83, %p84
      %p86 = scmp.ne.s32.totalorder %s72, %s73
      %p87 = scmp.eq.s32.totalorder %s23, 1
      %p88 = por %p86, %p87
      %p90 = scmp.ne.s32.totalorder %s73, %s89
      %p91 = scmp.eq.s32.totalorder %s23, 0
      %p92 = por %p90, %p91
      %s93 = ssub.s32 %s24, %s36
      %s94 = ssub.s32 %s25, %s32
      %s95 = sor.u32 %s93, %s94
      %p96 = scmp.eq.s32.totalorder %s95, 0
      %s98 = sadd.s32 %s97, 1
      %s99 = scalar_select %p96, %s97, %s98
      %p102 = pneg %p96
      %p103 = scmp.eq.s32.totalorder %s17, 1
      %p104 = por %p102, %p103
      %p105 = scmp.ne.s32.totalorder %s97, %s100
      %p106 = scmp.eq.s32.totalorder %s17, 0
      %p107 = por %p105, %p106
      %p108 = scmp.ne.s32.totalorder %s97, %s100
      %p109 = scmp.eq.s32.totalorder %s22, 1
      %p110 = por %p108, %p109
      %p111 = scmp.ne.s32.totalorder %s100, %s101
      %p112 = scmp.eq.s32.totalorder %s22, 0
      %p113 = por %p111, %p112
      %p114 = scmp.ne.s32.totalorder %s100, %s101
      %p115 = scmp.eq.s32.totalorder %s23, 1
      %p116 = por %p114, %p115
      %p118 = scmp.ne.s32.totalorder %s101, %s117
      %p119 = scmp.eq.s32.totalorder %s23, 0
      %p120 = por %p118, %p119
      %p121 = scmp.le.s32.totalorder 1, %s17
      %p122 = scmp.lt.s32.totalorder %s17, 3
      %p123 = pnand %p121, %p122
      %p124 = pneg %p123
      // Predicated region
      $region9: #{tpu_custom_call.1} parent=5 // pred_check
        _
      $region10: #{tpu_custom_call.1} parent=5 // pred_check_branch
        %126 = sbr.rel (%p123) target = $region12
      $region11: #{tpu_custom_call.1} parent=5 // pred_region
        %s127 = ssub.s32 %s17, 1
      $region12: #{tpu_custom_call.1} parent=5 // pred_fallthru
        _
      %p128 = scmp.lt.s32.totalorder %s17, 2
      // Predicated region
      $region13: #{tpu_custom_call.1} parent=5 // pred_check
        %p129 = pneg %p128
      $region14: #{tpu_custom_call.1} parent=5 // pred_check_branch
        %131 = sbr.rel (%p129) target = $region16
      $region15: #{tpu_custom_call.1} parent=5 // pred_region
        // Predicated region
        $region17: #{tpu_custom_call.1} parent=15 // pred_check
          %p132 = pneg %p51
        $region18: #{tpu_custom_call.1} parent=15 // pred_check_branch
          %134 = sbr.rel (%p132) target = $region20
        $region19: #{tpu_custom_call.1} parent=15 // pred_region
          %s135 = sand.u32 %s41, 1
          %s136 = scalar_lea.sflag [#allocation3], %s135
          %s137 = sand.u32 %s41, 1
          %s138 = smul.addr %s137, 2
          %s139 = scalar_lea.vmem [#allocation2], %s138
          %141 = vsyncadd %s136, 0
          %s142 = smul.addr %s24, 2
          %s143 = sadd.s32 %s25, %s142
          %s144 = scalar_lea.hbm %s0, %s143
          %s145 = sshll.u32 %s144, 4
          %s146 = int_to_ptr.hbm [resolvable:$true] %s145
          %s147 = sshll.u32 %s139, 4
          %s148 = int_to_ptr.vmem [resolvable:$true] %s147
          %153 = dma.hbm_to_vmem [thread:$0]  %s146, 32, %s148, %s136, 16, 16, 1
        $region20: #{tpu_custom_call.1} parent=15 // pred_fallthru
          _
        // Predicated region
        $region21: #{tpu_custom_call.1} parent=15 // pred_check
          %p154 = pneg %p79
        $region22: #{tpu_custom_call.1} parent=15 // pred_check_branch
          %156 = sbr.rel (%p154) target = $region24
        $region23: #{tpu_custom_call.1} parent=15 // pred_region
          %s157 = sand.u32 %s69, 1
          %s158 = scalar_lea.sflag [#allocation6], %s157
          %s159 = sand.u32 %s69, 1
          %s160 = smul.addr %s159, 2
          %s161 = scalar_lea.vmem [#allocation5], %s160
          %163 = vsyncadd %s158, 0
          %s164 = smul.addr %s24, 2
          %s165 = sadd.s32 %s25, %s164
          %s166 = scalar_lea.hbm %s1, %s165
          %s167 = sshll.u32 %s166, 4
          %s168 = int_to_ptr.hbm [resolvable:$true] %s167
          %s169 = sshll.u32 %s161, 4
          %s170 = int_to_ptr.vmem [resolvable:$true] %s169
          %175 = dma.hbm_to_vmem [thread:$0]  %s168, 32, %s170, %s158, 16, 16, 1
        $region24: #{tpu_custom_call.1} parent=15 // pred_fallthru
          _
      $region16: #{tpu_custom_call.1} parent=5 // pred_fallthru
        _
      %p176 = scmp.le.s32.totalorder 1, %s17
      %p177 = scmp.lt.s32.totalorder %s17, 3
      %p178 = pnand %p176, %p177
      %p179 = pneg %p178
      // Predicated region
      $region25: #{tpu_custom_call.1} parent=5 // pred_check
        _
      $region26: #{tpu_custom_call.1} parent=5 // pred_check_branch
        %181 = sbr.rel (%p178) target = $region28
      $region27: #{tpu_custom_call.1} parent=5 // pred_region
        %s182 = ssub.s32 %s17, 1
        %s183 = sand.u32 %s44, 1
        %s184 = scalar_lea.sflag [#allocation3], %s183
        %s185 = sand.u32 %s44, 1
        %s186 = smul.addr %s185, 2
        %s187 = scalar_lea.vmem [#allocation2], %s186
        // Predicated region
        $region29: #{tpu_custom_call.1} parent=27 // pred_check
          %p188 = pneg %p57
        $region30: #{tpu_custom_call.1} parent=27 // pred_check_branch
          %190 = sbr.rel (%p188) target = $region32
        $region31: #{tpu_custom_call.1} parent=27 // pred_region
          %192 = dma.done %s184, 32
        $region32: #{tpu_custom_call.1} parent=27 // pred_fallthru
          _
        %s193 = sand.u32 %s72, 1
        %s194 = scalar_lea.sflag [#allocation6], %s193
        %s195 = sand.u32 %s72, 1
        %s196 = smul.addr %s195, 2
        %s197 = scalar_lea.vmem [#allocation5], %s196
        // Predicated region
        $region33: #{tpu_custom_call.1} parent=27 // pred_check
          %p198 = pneg %p85
        $region34: #{tpu_custom_call.1} parent=27 // pred_check_branch
          %200 = sbr.rel (%p198) target = $region36
        $region35: #{tpu_custom_call.1} parent=27 // pred_region
          %202 = dma.done %s194, 32
        $region36: #{tpu_custom_call.1} parent=27 // pred_fallthru
          _
        %s203 = sand.u32 %s44, 1
        %s204 = scalar_lea.sflag [#allocation3], %s203
        %s205 = sand.u32 %s44, 1
        %s206 = smul.addr %s205, 2
        %s207 = scalar_lea.vmem [#allocation2], %s206
        %p208 = pneg %p57
        %p209 = pneg %p54
        %s210 = sand.u32 %s72, 1
        %s211 = scalar_lea.sflag [#allocation6], %s210
        %s212 = sand.u32 %s72, 1
        %s213 = smul.addr %s212, 2
        %s214 = scalar_lea.vmem [#allocation5], %s213
        %p215 = pneg %p85
        %p216 = pneg %p82
        %p217 = pneg %p113
        %p218 = pneg %p110
        %s219 = sand.u32 %s100, 1
        %s220 = scalar_lea.sflag [#allocation4], %s219
        %s221 = sand.u32 %s100, 1
        %s222 = smul.addr %s221, 2
        %s223 = scalar_lea.vmem [#allocation7], %s222
        %v224 = vld [vmem:[%s187] sm:$0x1]
        %s225 = scalar_lea.vmem %s187, 1 [#allocation2]
        %v226 = vld [vmem:[%s225] sm:$0x1]
        %v227 = vmul.f32 %v226, 0.5
        %v228 = vmul.f32 %v227, 1.442695
        %v229 = vpow.pop %v228
        %v230 = vld [vmem:[%s197] sm:$0x1]
        %v231 = vmul.f32 %v230, %v229
        %v232 = vadd.f32 %v231, %v224
        %vm233 = vcmask 253952
        %234 = vst.msk [vmem:[%s223] sm:$0x1] %vm233, %v232
        %s235 = scalar_lea.vmem %s197, 1 [#allocation5]
        %v236 = vld [vmem:[%s235] sm:$0x1]
        %v237 = vmul.f32 %v236, %v229
        %v238 = vadd.f32 %v237, %v224
        %s239 = scalar_lea.vmem %s223, 1 [#allocation7]
        %240 = vst.msk [vmem:[%s239] sm:$0x1] %vm233, %v238
        %s241 = sand.u32 %s100, 1
        %s242 = scalar_lea.sflag [#allocation4], %s241
        %s243 = sand.u32 %s100, 1
        %s244 = smul.addr %s243, 2
        %s245 = scalar_lea.vmem [#allocation7], %s244
        // Predicated region
        $region37: #{tpu_custom_call.1} parent=27 // pred_check
          %p246 = pneg %p110
        $region38: #{tpu_custom_call.1} parent=27 // pred_check_branch
          %248 = sbr.rel (%p246) target = $region40
        $region39: #{tpu_custom_call.1} parent=27 // pred_region
          %250 = vsyncadd %s242, 0
          %s251 = smul.addr %s26, 2
          %s252 = sadd.s32 %s27, %s251
          %s253 = scalar_lea.hbm %s2, %s252
          %s254 = sshll.u32 %s245, 4
          %s255 = int_to_ptr.vmem [resolvable:$true] %s254
          %s256 = sshll.u32 %s253, 4
          %s257 = int_to_ptr.hbm [resolvable:$true] %s256
          %262 = dma.vmem_to_hbm [thread:$0]  %s255, 32, %s257, %s242, 16, 16, 1
        $region40: #{tpu_custom_call.1} parent=27 // pred_fallthru
          _
      $region28: #{tpu_custom_call.1} parent=5 // pred_fallthru
        _
      %p263 = scmp.le.s32.totalorder 2, %s17
      // Predicated region
      $region41: #{tpu_custom_call.1} parent=5 // pred_check
        %p264 = pneg %p263
      $region42: #{tpu_custom_call.1} parent=5 // pred_check_branch
        %266 = sbr.rel (%p264) target = $region44
      $region43: #{tpu_custom_call.1} parent=5 // pred_region
        %s267 = ssub.s32 %s17, 2
        // Predicated region
        $region45: #{tpu_custom_call.1} parent=43 // pred_check
          %p268 = pneg %p116
        $region46: #{tpu_custom_call.1} parent=43 // pred_check_branch
          %270 = sbr.rel (%p268) target = $region48
        $region47: #{tpu_custom_call.1} parent=43 // pred_region
          %s271 = sand.u32 %s101, 1
          %s272 = scalar_lea.sflag [#allocation4], %s271
          %s273 = sand.u32 %s101, 1
          %s274 = smul.addr %s273, 2
          %s275 = scalar_lea.vmem [#allocation7], %s274
          %277 = dma.done %s272, 32
        $region48: #{tpu_custom_call.1} parent=43 // pred_fallthru
          _
      $region44: #{tpu_custom_call.1} parent=5 // pred_fallthru
        _
    $region6: #{tpu_custom_call.1} parent=1 // loop_footer
      %s21 = sadd.s32 1, %s17
    $region7: #{tpu_custom_call.1} parent=1 // loop_footer_branch
      %16 = sbr.rel target = $region3
    $region8: #{tpu_custom_call.1} parent=1 // loop_exit
      _
    %278 = vsyncpa [#allocation3], 1
    %s279 = scalar_lea.sflag [#allocation3], 1
    %280 = vsyncpa %s279, 1
    %281 = vsyncpa [#allocation6], 1
    %s282 = scalar_lea.sflag [#allocation6], 1
    %283 = vsyncpa %s282, 1
    %284 = vsyncpa [#allocation4], 1
    %s285 = scalar_lea.sflag [#allocation4], 1
    %286 = vsyncpa %s285, 1

</llo_original>
